<compile_context>
chip_gen: v7x
topology: tpu7x:2x2x1
jax: 0.10.0
libtpu: 0.0.40
codegen_flags: <defaults>
</compile_context>

<pallas_src>
import functools

import jax
import jax.numpy as jnp
from jax.experimental import pallas as pl
from jax.experimental.pallas import tpu as pltpu


# ---------------------------------------------------------------------------
# Kernel 1: streaming mean-pool over the sequence axis.
# ---------------------------------------------------------------------------
def _mean_pool_kernel(x_ref, out_ref, *, seq_len, ts, mask_tail):
    s = pl.program_id(1)

    @pl.when(s == 0)
    def _():
        out_ref[...] = jnp.zeros_like(out_ref)

    x = x_ref[...]                                            # (TB, TS, H), input dtype
    if mask_tail:
        # The last seq tile may straddle the array boundary; zero invalid rows.
        row = jax.lax.broadcasted_iota(jnp.int32, x.shape, 1)
        x = jnp.where(s * ts + row < seq_len, x, jnp.zeros_like(x))
    # Accumulate in f32 without materializing an f32 copy of a bf16 tile.
    out_ref[...] += jnp.sum(x, axis=1, dtype=jnp.float32)     # (TB, H)

    @pl.when(s == pl.num_programs(1) - 1)
    def _():
        out_ref[...] *= jnp.float32(1.0 / seq_len)            # true-S mean


# ---------------------------------------------------------------------------
# Kernel 2: tiny head MLPs on the pooled (B, H) tensor.
# ---------------------------------------------------------------------------
def _head_kernel(pooled_ref, w_in_ref, b_in_ref, w2_ref, b2_ref, w3_ref, b3_ref,
                 wc2_row_ref, bc2_ref, we2_row_ref, be2_ref,
                 out_ref, acc_ref, *, h2, h4, num_risk):
    k = pl.program_id(1)

    @pl.when(k == 0)
    def _():
        acc_ref[...] = jnp.zeros_like(acc_ref)

    # K-tiled fused first layers of the risk / confidence / evidence heads.
    acc_ref[...] += jnp.dot(pooled_ref[...], w_in_ref[...],
                            preferred_element_type=jnp.float32)

    @pl.when(k == pl.num_programs(1) - 1)
    def _():
        h_all = jnp.maximum(acc_ref[...] + b_in_ref[...], 0.0)
        h1 = h_all[:, :h2]                   # risk branch          (TB, H2)
        hc = h_all[:, h2:h2 + h4]            # confidence branch    (TB, H4)
        he = h_all[:, h2 + h4:]              # evidence branch      (TB, H2)
        # TODO(synk): training-mode Dropout(0.1) after h1 is an identity here.

        # Risk head: Linear -> ReLU -> Linear -> softmax.
        a2 = jnp.maximum(
            jnp.dot(h1, w2_ref[...], preferred_element_type=jnp.float32)
            + b2_ref[...], 0.0)
        logits = (jnp.dot(a2, w3_ref[...], preferred_element_type=jnp.float32)
                  + b3_ref[...])
        m = jnp.max(logits, axis=-1, keepdims=True)
        e = jnp.exp(logits - m)
        probs = e / jnp.sum(e, axis=-1, keepdims=True)        # (TB, R)

        # argmax with torch-style first-max-index tie-breaking.
        idx = jax.lax.broadcasted_iota(jnp.int32, probs.shape, 1)
        maxp = jnp.max(probs, axis=-1, keepdims=True)
        level = jnp.min(jnp.where(probs == maxp, idx, jnp.int32(num_risk)),
                        axis=-1, keepdims=True)               # (TB, 1) int32

        # N=1 projections on the VPU (broadcast-mul + lane reduce; skip MXU).
        conf = jax.nn.sigmoid(
            jnp.sum(hc * wc2_row_ref[...], axis=-1, keepdims=True) + bc2_ref[...])
        ev = jax.nn.sigmoid(
            jnp.sum(he * we2_row_ref[...], axis=-1, keepdims=True) + be2_ref[...])

        safety = conf * (1.0 - probs[:, num_risk - 1:num_risk])

        # Packed output slab: [probs | conf | ev | safety | level].
        out_ref[...] = jnp.concatenate(
            [probs, conf, ev, safety, level.astype(jnp.float32)], axis=-1)


# ---------------------------------------------------------------------------
# Tile / budget selection helpers.
# ---------------------------------------------------------------------------
def _vmem_budget_bytes():
    """Usable VMEM budget (bytes), generation-aware with compiler headroom."""
    cap = 64 << 20                       # conservative default (v7x per-core VMEM)
    try:
        info = pltpu.get_tpu_info()
        cap = int(getattr(info, "vmem_capacity_bytes", cap) or cap)
    except Exception:
        pass
    # ~48 MiB usable on v7x (64 MiB physical), ~96 MiB on v5e/v6e (128 MiB).
    return (cap * 3) // 4


def _choose_batch_tile(B):
    """A multiple of 8 dividing B, with >= 2 tiles when possible so the
    'parallel' batch grid axis can feed both v7x TensorCores."""
    if B % 8 == 0 and B >= 16:
        for cand in (512, 256, 128, 64, 32, 16, 8):
            if cand <= B // 2 and B % cand == 0:
                return cand
        return 8
    return B


def _choose_seq_tile(S, H, TB, itemsize, budget_bytes):
    """Largest seq tile whose double-buffered slab fits the budget, rounded to
    the sublane-packing granule; prefer a divisor of S (no ragged tail).
    Returns (TS, mask_tail)."""
    align = max(8, 32 // max(itemsize, 1))        # 8 rows f32, 16 bf16, 32 int8
    per_row = 2 * TB * H * itemsize               # double-buffered bytes / seq row
    max_ts = max(align, (budget_bytes // max(per_row, 1)) // align * align)
    if S <= max_ts:
        return S, False                           # whole sequence in one tile
    for ts in range(max_ts, 0, -align):           # divisor of S near the target
        if S % ts == 0:
            return ts, False
        if max_ts - ts >= 32 * align:             # don't stray far below budget
            break
    return max_ts, True                           # ragged tail; mask in-kernel


def _choose_k_tile(H, w_all, TB, budget_bytes):
    """K tile (multiple of 128 dividing H) for the fused first-layer matmul."""
    per_k = 2 * (w_all + TB) * 4                  # double-buffered w_in + pooled rows
    if H * per_k <= budget_bytes or H % 128 != 0:
        return H
    limit = max(128, (budget_bytes // per_k) // 128 * 128)
    best = H
    for tk in range(128, H, 128):
        if H % tk == 0 and tk <= limit:
            best = tk
    return best


# ---------------------------------------------------------------------------
# Wrapper.
# ---------------------------------------------------------------------------
def medical_safety_gate(hidden_states, params):
    """hidden_states: (B, S, H) or (B, H).  params: dict of (in, out) weights."""
    budget = _vmem_budget_bytes()

    # ---- Stage 1: streaming mean-pool over the sequence axis.
    if hidden_states.ndim == 3:
        B, S, H = hidden_states.shape
        TB = _choose_batch_tile(B)
        out_block_bytes = 4 * TB * H * 4          # pooled output blocks (f32)
        TS, mask_tail = _choose_seq_tile(
            S, H, TB, hidden_states.dtype.itemsize,
            max(budget - out_block_bytes - (2 << 20), 1 << 20))
        pooled = pl.pallas_call(
            functools.partial(_mean_pool_kernel, seq_len=S, ts=TS,
                              mask_tail=mask_tail),
            out_shape=jax.ShapeDtypeStruct((B, H), jnp.float32),
            grid_spec=pltpu.PrefetchScalarGridSpec(
                num_scalar_prefetch=0,
                grid=(B // TB, pl.cdiv(S, TS)),
                in_specs=[pl.BlockSpec((TB, TS, H), lambda b, s: (b, s, 0))],
                out_specs=pl.BlockSpec((TB, H), lambda b, s: (b, 0))),
            compiler_params=pltpu.CompilerParams(
                dimension_semantics=("parallel", "arbitrary"),
                vmem_limit_bytes=budget),
        )(hidden_states)
    else:
        B, H = hidden_states.shape
        pooled = hidden_states.astype(jnp.float32)

    # ---- Stage 2: tiny head MLPs on pooled (B, H).
    R = params["w3"].shape[-1]
    H2 = params["w1"].shape[-1]
    H4 = params["w2"].shape[-1]
    W_ALL = H2 + H4 + H2
    OUT_W = R + 4                                 # [probs | conf | ev | safety | level]

    # Host-side fusion of the three first-layer projections -> one matmul.
    w_in = jnp.concatenate([params["w1"], params["wc1"], params["we1"]], axis=1)
    b_in = jnp.concatenate([params["b1"], params["bc1"], params["be1"]], axis=1)
    wc2_row = params["wc2"].T                     # (1, H4)
    we2_row = params["we2"].T                     # (1, H2)

    TB2 = _choose_batch_tile(B)
    TK = _choose_k_tile(
        H, W_ALL, TB2,
        max(budget - 2 * TB2 * W_ALL * 4 - (2 << 20), 1 << 20))

    const_args = (b_in, params["w2"], params["b2"], params["w3"], params["b3"],
                  wc2_row, params["bc2"], we2_row, params["be2"])

    packed = pl.pallas_call(
        functools.partial(_head_kernel, h2=H2, h4=H4, num_risk=R),
        out_shape=jax.ShapeDtypeStruct((B, OUT_W), jnp.float32),
        grid_spec=pltpu.PrefetchScalarGridSpec(
            num_scalar_prefetch=0,
            grid=(B // TB2, H // TK),
            in_specs=[pl.BlockSpec((TB2, TK), lambda b, k: (b, k)),
                      pl.BlockSpec((TK, W_ALL), lambda b, k: (k, 0))]
                     + [pl.BlockSpec(a.shape, lambda b, k: (0, 0))
                        for a in const_args],
            out_specs=pl.BlockSpec((TB2, OUT_W), lambda b, k: (b, 0)),
            scratch_shapes=[pltpu.VMEM((TB2, W_ALL), jnp.float32)]),
        compiler_params=pltpu.CompilerParams(
            dimension_semantics=("parallel", "arbitrary"),
            vmem_limit_bytes=budget),
    )(pooled, w_in, *const_args)

    return {
        "risk_probabilities": packed[:, :R],
        "risk_level": packed[:, R + 3].astype(jnp.int32),      # (B,)
        "confidence": packed[:, R:R + 1],
        "evidence_score": packed[:, R + 1:R + 2],
        "safety_score": packed[:, R + 2:R + 3],
    }


# ---------------------------------------------------------------------------
# Params / reference / test harness.
# ---------------------------------------------------------------------------
def init_params(key, hidden_dim, num_risk_levels=4):
    """Deterministic synthetic parameters. Linear weights stored as (in, out)."""
    h2, h4 = hidden_dim // 2, hidden_dim // 4
    shapes = {
        "w1": (hidden_dim, h2), "b1": (1, h2),
        "w2": (h2, h4),         "b2": (1, h4),
        "w3": (h4, num_risk_levels), "b3": (1, num_risk_levels),
        "wc1": (hidden_dim, h4), "bc1": (1, h4),
        "wc2": (h4, 1),          "bc2": (1, 1),
        "we1": (hidden_dim, h2), "be1": (1, h2),
        "we2": (h2, 1),          "be2": (1, 1),
    }
    params = {}
    for name, shape in sorted(shapes.items()):
        key, sub = jax.random.split(key)
        params[name] = 0.1 * jax.random.normal(sub, shape, dtype=jnp.float32)
    return params


def reference(hidden_states, params):
    """Pure-JAX reference for correctness checking."""
    pooled = hidden_states.mean(axis=1) if hidden_states.ndim == 3 else hidden_states
    relu = lambda v: jnp.maximum(v, 0.0)
    h = relu(pooled @ params["w1"] + params["b1"])
    h = relu(h @ params["w2"] + params["b2"])
    logits = h @ params["w3"] + params["b3"]
    probs = jax.nn.softmax(logits, axis=-1)
    conf = jax.nn.sigmoid(relu(pooled @ params["wc1"] + params["bc1"]) @ params["wc2"]
                          + params["bc2"])
    ev = jax.nn.sigmoid(relu(pooled @ params["we1"] + params["be1"]) @ params["we2"]
                        + params["be2"])
    return {
        "risk_probabilities": probs,
        "risk_level": jnp.argmax(probs, axis=-1),
        "confidence": conf,
        "evidence_score": ev,
        "safety_score": conf * (1.0 - probs[:, -1:]),
    }


if __name__ == "__main__":
    B, S, H, R = 2, 8, 32, 4
    key = jax.random.PRNGKey(0)
    key, xkey = jax.random.split(key)
    hidden_states = jax.random.normal(xkey, (B, S, H), dtype=jnp.float32)
    params = init_params(key, H, R)

    out = medical_safety_gate(hidden_states, params)
    out = jax.tree_util.tree_map(jax.block_until_ready, out)

    ref = reference(hidden_states, params)
    assert out["risk_probabilities"].shape == (B, R)
    assert out["risk_level"].shape == (B,)
    assert out["confidence"].shape == (B, 1)
    assert out["evidence_score"].shape == (B, 1)
    assert out["safety_score"].shape == (B, 1)
    for k in ("risk_probabilities", "confidence", "evidence_score", "safety_score"):
        assert jnp.allclose(out[k], ref[k], atol=1e-5, rtol=1e-5), k
    assert jnp.all(out["risk_level"] == ref["risk_level"].astype(jnp.int32))

    print("KERNEL_OK")
</pallas_src>

<mosaic_0001>
module attributes {stable_mosaic.version = 11 : i64} {
  func.func @_mean_pool_kernel(%arg0: i32, %arg1: i32, %arg2: memref<2x8x32xf32, #tpu.memory_space<vmem>>, %arg3: memref<2x32xf32, #tpu.memory_space<vmem>>) attributes {dimension_semantics = [#tpu.dimension_semantics<parallel>, #tpu.dimension_semantics<arbitrary>], iteration_bounds = array<i64: 1, 1>, scalar_prefetch = 0 : i64, scratch_operands = 0 : i64, tpu.core_type = #tpu.core_type<tc>, window_params = [{transform_indices = @transform_0, window_bounds = array<i64: 2, 8, 32>}, {transform_indices = @transform_1, window_bounds = array<i64: 2, 32>}]} {
    %c0_i32 = arith.constant 0 : i32
    %0 = arith.cmpi eq, %arg1, %c0_i32 : i32
    %1 = arith.extui %0 : i1 to i32
    %c0_i32_0 = arith.constant 0 : i32
    %2 = arith.cmpi ne, %1, %c0_i32_0 : i32
    scf.if %2 {
      %cst_9 = arith.constant 0.000000e+00 : f32
      %11 = vector.broadcast %cst_9 : f32 to vector<2x32xf32>
      %c0_10 = arith.constant 0 : index
      %c0_11 = arith.constant 0 : index
      %12 = vector.load %arg3[%c0_10, %c0_11] : memref<2x32xf32, #tpu.memory_space<vmem>>, vector<2x32xf32>
      tpu.vector_store %arg3[%c0_10, %c0_11], %11 {strides = array<i32>} : memref<2x32xf32, #tpu.memory_space<vmem>>, vector<2x32xf32>,
    } else {
    }
    %c0 = arith.constant 0 : index
    %c0_1 = arith.constant 0 : index
    %c0_2 = arith.constant 0 : index
    %3 = vector.load %arg2[%c0, %c0_1, %c0_2] : memref<2x8x32xf32, #tpu.memory_space<vmem>>, vector<2x8x32xf32>
    %c0_3 = arith.constant 0 : index
    %c0_4 = arith.constant 0 : index
    %4 = vector.load %arg3[%c0_3, %c0_4] : memref<2x32xf32, #tpu.memory_space<vmem>>, vector<2x32xf32>
    %cst = arith.constant dense<0.000000e+00> : vector<2x32xf32>
    %5 = vector.multi_reduction <add>, %3, %cst [1] : vector<2x8x32xf32> to vector<2x32xf32>
    %6 = arith.addf %4, %5 : vector<2x32xf32>
    %c0_5 = arith.constant 0 : index
    %c0_6 = arith.constant 0 : index
    %7 = vector.load %arg3[%c0_5, %c0_6] : memref<2x32xf32, #tpu.memory_space<vmem>>, vector<2x32xf32>
    tpu.vector_store %arg3[%c0_5, %c0_6], %6 {strides = array<i32>} : memref<2x32xf32, #tpu.memory_space<vmem>>, vector<2x32xf32>,
    %c0_i32_7 = arith.constant 0 : i32
    %8 = arith.cmpi eq, %arg1, %c0_i32_7 : i32
    %9 = arith.extui %8 : i1 to i32
    %c0_i32_8 = arith.constant 0 : i32
    %10 = arith.cmpi ne, %9, %c0_i32_8 : i32
    scf.if %10 {
      %c0_9 = arith.constant 0 : index
      %c0_10 = arith.constant 0 : index
      %11 = vector.load %arg3[%c0_9, %c0_10] : memref<2x32xf32, #tpu.memory_space<vmem>>, vector<2x32xf32>
      %cst_11 = arith.constant 1.250000e-01 : f32
      %12 = vector.broadcast %cst_11 : f32 to vector<2x32xf32>
      %13 = arith.mulf %11, %12 : vector<2x32xf32>
      %c0_12 = arith.constant 0 : index
      %c0_13 = arith.constant 0 : index
      %14 = vector.load %arg3[%c0_12, %c0_13] : memref<2x32xf32, #tpu.memory_space<vmem>>, vector<2x32xf32>
      tpu.vector_store %arg3[%c0_12, %c0_13], %13 {strides = array<i32>} : memref<2x32xf32, #tpu.memory_space<vmem>>, vector<2x32xf32>,
    } else {
    }
    return
  }
  func.func @transform_0(%arg0: i32, %arg1: i32) -> (i32, i32, i32) {
    %c0_i32 = arith.constant 0 : i32
    %c0_i32_0 = arith.constant 0 : i32
    return %arg0, %arg1, %c0_i32 : i32, i32, i32
  }
  func.func @transform_1(%arg0: i32, %arg1: i32) -> (i32, i32) {
    %c0_i32 = arith.constant 0 : i32
    %c0_i32_0 = arith.constant 0 : i32
    return %arg0, %c0_i32 : i32, i32
  }
}

</mosaic_0001>

<llo_original>
// kernel: tpu_custom_call.1
$region0: #{tpu_custom_call.1}
  #allocation0 [shape = 'u32[]', space=smem, size = 0x4, offset = 0x4, fixed_abs, tag = 'smem constant byte address 0x4 - core index']
  #allocation1 [shape = 'u32[144,128]{1,0:T(1,128)}', space=vmem, size = 0x12000, scoped, tag = 'internal scratch']
  %s0 = inlined_call_operand.hbm [shape: f32[2,8,32], index: 0, kind: input, shape index: {}]
  %s1 = inlined_call_operand.hbm [shape: f32[2,32], index: 1, kind: output, shape index: {}]
  %s2 = sld [smem:[#allocation0]]
  $region26: #{tpu_custom_call.1} parent=0
    _
  %s4 = ssub.s32 1, %s2
  %s5 = scalar_select 0, %s4, %s2
  $region1: #{tpu_custom_call.1} parent=0
    #allocation2 [shape = 'u8[8192]{0}', space=vmem, size = 0x2000, scoped, tag = 'input window, operand 0, single buffered']
    #allocation3 [shape = 's32[1]{0}', space=sflag, size = 0x4, scoped, tag = 'scoped memory for tpu_custom_call.1']
    #allocation4 [shape = 's32[1]{0}', space=sflag, size = 0x4, scoped, tag = 'scoped memory for tpu_custom_call.1']
    #allocation5 [shape = 'u8[1024]{0}', space=vmem, size = 0x400, scoped, tag = 'output window, operand 0, single buffered']
    %6 = vsyncpa [#allocation3], 0
    %7 = vsyncpa [#allocation4], 0
    // Predicated region
    $region2: #{tpu_custom_call.1} parent=1 // pred_check
      _
    $region3: #{tpu_custom_call.1} parent=1 // pred_check_branch
      %9 = sbr.rel (0) target = $region5
    $region4: #{tpu_custom_call.1} parent=1 // pred_region
      %s11 = ssub.s32 256, 256
      %12 = vsyncadd [#allocation3], %s11
      %s13 = sshll.u32 [#allocation2], 4
      %s14 = int_to_ptr.vmem [resolvable:$true] %s13
      %19 = dma.hbm_to_vmem [thread:$0]  %s0, 256, %s14, [#allocation3], 128, 128, 8
    $region5: #{tpu_custom_call.1} parent=1 // pred_fallthru
      _
    // Predicated region
    $region6: #{tpu_custom_call.1} parent=1 // pred_check
      _
    $region7: #{tpu_custom_call.1} parent=1 // pred_check_branch
      %21 = sbr.rel (0) target = $region9
    $region8: #{tpu_custom_call.1} parent=1 // pred_region
      %22 = dma.done [#allocation3], 256
    $region9: #{tpu_custom_call.1} parent=1 // pred_fallthru
      _
    %p23 = scmp.eq.s32.totalorder 0, 0
    // Predicated region
    $region10: #{tpu_custom_call.1} parent=1 // pred_check
      %p24 = pneg %p23
    $region11: #{tpu_custom_call.1} parent=1 // pred_check_branch
      %26 = sbr.rel (%p24) target = $region13
    $region12: #{tpu_custom_call.1} parent=1 // pred_region
      %vm27 = vcmask 254976
      %28 = vst.msk [vmem:[#allocation5] sm:$0x3] %vm27, 0.0
    $region13: #{tpu_custom_call.1} parent=1 // pred_fallthru
      _
    %v29 = vld [vmem:[#allocation2] sm:$0xff]
    %v30 = vld [vmem:[#allocation2 + $0x8] sm:$0xff]
    %v31 = vld [vmem:[#allocation5] sm:$0x3]
    %vm32 = vcmask 261120
    %v33 = vsel %vm32, %v29, 0.0
    %v34 = vrot.slane %v33, 4
    %v35 = vadd.f32 %v33, %v34
    %v36 = vrot.slane %v35, 2
    %v37 = vadd.f32 %v35, %v36
    %v38 = vrot.slane %v37, 1
    %v39 = vadd.f32 %v37, %v38
    %v40 = vsel %vm32, %v30, 0.0
    %v41 = vrot.slane %v40, 4
    %v42 = vadd.f32 %v40, %v41
    %v43 = vrot.slane %v42, 2
    %v44 = vadd.f32 %v42, %v43
    %v45 = vrot.slane %v44, 1
    %v46 = vadd.f32 %v44, %v45
    %vm49 = vcmask 1041409
    %v50 = vsel %vm49, %v46, %v39
    %v52 = vadd.f32 %v31, %v50
    %vm53 = vcmask 254976
    %54 = vst.msk [vmem:[#allocation5] sm:$0x3] %vm53, %v52
    // Predicated region
    $region14: #{tpu_custom_call.1} parent=1 // pred_check
      %p55 = pneg %p23
    $region15: #{tpu_custom_call.1} parent=1 // pred_check_branch
      %57 = sbr.rel (%p55) target = $region17
    $region16: #{tpu_custom_call.1} parent=1 // pred_region
      %v58 = vld [vmem:[#allocation5] sm:$0x3]
      %v59 = vmul.f32 %v58, 0.125
      %60 = vst.msk [vmem:[#allocation5] sm:$0x3] %vm53, %v59
    $region17: #{tpu_custom_call.1} parent=1 // pred_fallthru
      _
    // Predicated region
    $region18: #{tpu_custom_call.1} parent=1 // pred_check
      _
    $region19: #{tpu_custom_call.1} parent=1 // pred_check_branch
      %62 = sbr.rel (0) target = $region21
    $region20: #{tpu_custom_call.1} parent=1 // pred_region
      %s64 = ssub.s32 32, 32
      %65 = vsyncadd [#allocation4], %s64
      %s67 = sshll.u32 [#allocation5], 4
      %s68 = int_to_ptr.vmem [resolvable:$true] %s67
      %70 = dma.vmem_to_hbm [thread:$0]  %s68, 32, %s1, [#allocation4]
    $region21: #{tpu_custom_call.1} parent=1 // pred_fallthru
      _
    // Predicated region
    $region22: #{tpu_custom_call.1} parent=1 // pred_check
      _
    $region23: #{tpu_custom_call.1} parent=1 // pred_check_branch
      %72 = sbr.rel (0) target = $region25
    $region24: #{tpu_custom_call.1} parent=1 // pred_region
      %73 = dma.done [#allocation4], 32
    $region25: #{tpu_custom_call.1} parent=1 // pred_fallthru
      _
    %74 = vsyncpa [#allocation3], 1
    %75 = vsyncpa [#allocation4], 1

</llo_original>
